<compile_context>
chip_gen: v5e
topology: v5e:2x2
jax: 0.10.0
libtpu: 0.0.40
codegen_flags: <defaults>
</compile_context>

<pallas_src>
import functools

import jax
import jax.numpy as jnp
from jax.experimental import pallas as pl
from jax.experimental.pallas import tpu as pltpu

LANE = 128      # vreg lane width
SUBLANE = 8     # vreg sublane count


# ----------------------------------------------------------------------------
# Fused Pallas kernel: (folded conv + params) -> MLP body -> all heads
# ----------------------------------------------------------------------------
def _fused_kernel(xp_ref, xl_ref, w1p_ref, w1l_ref, b1_ref, *rest, n_rest):
    """rest = [w, b] * n_rest           (remaining body linears)
            + [wd, bd, ww, bw]          (concatenated, lane-padded head weights)
            + [d_ref, p_ref, wt_ref]    (outputs, (M_pad, 128))
    """
    body = rest[: 2 * n_rest]
    wd_ref, bd_ref, ww_ref, bw_ref = rest[2 * n_rest: 2 * n_rest + 4]
    d_ref, p_ref, wt_ref = rest[2 * n_rest + 4:]

    xp = xp_ref[...]  # (M_pad, 128): concat(params) in first 59 lanes, rest 0

    # Layer 1: params part + merged (conv o W1_latent) applied to raw NCHW latent.
    h = (jnp.dot(xp, w1p_ref[...], preferred_element_type=jnp.float32)
         + jnp.dot(xl_ref[...], w1l_ref[...], preferred_element_type=jnp.float32)
         + b1_ref[...])
    h = jnp.maximum(h, 0.0)

    # Remaining body linears: ReLU on all but the last.
    for li in range(n_rest):
        w = body[2 * li][...]
        b = body[2 * li + 1][...]
        h = jnp.dot(h, w, preferred_element_type=jnp.float32) + b
        if li < n_rest - 1:
            h = jnp.maximum(h, 0.0)

    # All delta heads / all weight heads as one lane-dense matmul each.
    d = jnp.dot(h, wd_ref[...], preferred_element_type=jnp.float32) + bd_ref[...]
    wt = jnp.dot(h, ww_ref[...], preferred_element_type=jnp.float32) + bw_ref[...]

    d_ref[...] = d
    p_ref[...] = d + xp                          # priors = deltas + values
    # elu(w) + 1 == w + 1 (w > 0) / exp(w) (w <= 0)   (exact for alpha = 1)
    wt_ref[...] = jnp.where(wt > 0.0, wt + 1.0, jnp.exp(wt))


def _full_spec(shape):
    # Whole-array block (satisfies the (8,128) rule by equaling full dims).
    return pl.BlockSpec(shape, lambda i, _n=len(shape): (0,) * _n)


def _fused_call(xp_pad, xl_pad, fused):
    M = xp_pad.shape[0]
    inputs = [xp_pad, xl_pad, fused["w1p"], fused["w1l"], fused["b1"]]
    for (w, b) in fused["body_rest"]:
        inputs += [w, b]
    inputs += [fused["wd"], fused["bd"], fused["ww"], fused["bw"]]
    n_rest = len(fused["body_rest"])

    out_shape = tuple(jax.ShapeDtypeStruct((M, LANE), jnp.float32)
                      for _ in range(3))
    return pl.pallas_call(
        functools.partial(_fused_kernel, n_rest=n_rest),
        grid=(1,),
        in_specs=[_full_spec(x.shape) for x in inputs],
        out_specs=tuple(_full_spec((M, LANE)) for _ in range(3)),
        out_shape=out_shape,
        compiler_params=pltpu.CompilerParams(
            dimension_semantics=("arbitrary",)),
    )(*inputs)


# ----------------------------------------------------------------------------
# Parameter construction (deterministic, synthetic, PyTorch-like layout)
# ----------------------------------------------------------------------------
def _init_linear(key, in_dim, out_dim):
    kw, kb = jax.random.split(key)
    bound = 1.0 / jnp.sqrt(jnp.float32(in_dim))
    w = jax.random.uniform(kw, (in_dim, out_dim), jnp.float32, -bound, bound)
    b = jax.random.uniform(kb, (out_dim,), jnp.float32, -bound, bound)
    return w, b


def build_module_params(key, *, features, depth, latent_scale, unet_features,
                        unet_depth, unet_size, expression_params, shape_params):
    factor = 2 ** unet_depth
    usize = int(unet_size // factor)
    ufeat = int(unet_features * factor)

    keys = jax.random.split(key, 64)
    k_iter = iter(keys)

    P = {}
    # 1x1 conv == linear over channels: weight (C_in, latent_scale), bias (ls,)
    P["conv_w"], P["conv_b"] = _init_linear(next(k_iter), ufeat, latent_scale)

    in_dim = usize * usize * latent_scale + 59
    body = [_init_linear(next(k_iter), in_dim, features)]          # + ReLU
    for _ in range(depth - 1):
        body.append(_init_linear(next(k_iter), features, features))  # + ReLU
    body.append(_init_linear(next(k_iter), features, features))      # no act
    P["body"] = body

    head_dims = dict(shape_params=shape_params,
                     expression_params=expression_params,
                     transl=3, global_pose=3, neck_pose=3)
    P["delta_heads"] = {k: _init_linear(next(k_iter), features, d)
                        for k, d in head_dims.items()}
    P["weight_heads"] = {k: _init_linear(next(k_iter), features, d)
                         for k, d in head_dims.items()}
    P["_meta"] = dict(usize=usize, ufeat=ufeat,
                      latent_scale=latent_scale, features=features)
    return P


# ----------------------------------------------------------------------------
# One-time fusion / padding of weights (hoisted out of the forward pass)
# ----------------------------------------------------------------------------
def prepare_fused_params(module_params, key_order, key_dims):
    meta = module_params["_meta"]
    H = W = meta["usize"]
    C = meta["ufeat"]
    ls = meta["latent_scale"]
    F = meta["features"]
    n_par = sum(key_dims[k] for k in key_order)          # 59

    conv_w = module_params["conv_w"].astype(jnp.float32)  # (C, ls)
    conv_b = module_params["conv_b"].astype(jnp.float32)  # (ls,)

    body = module_params["body"]
    w1, b1 = body[0]
    w1 = w1.astype(jnp.float32)
    b1 = b1.astype(jnp.float32)
    w1_params = w1[:n_par]                                # (59, F)
    w1_conv = w1[n_par:].reshape(ls, H, W, F)             # (o, h, w, F)

    # Fold the 1x1 conv into the first body linear (exact linear composition):
    #   x_conv @ W1c == latent_flat @ W1l + const_bias
    w1l = jnp.einsum("co,ohwf->chwf", conv_w, w1_conv).reshape(C * H * W, F)
    b1_adj = b1 + jnp.einsum("o,ohwf->f", conv_b, w1_conv)

    # Pad the params-branch weight to 128 rows so it matches the lane-padded xp.
    w1p = jnp.zeros((LANE, F), jnp.float32).at[:n_par].set(w1_params)

    body_rest = [(w.astype(jnp.float32), b.reshape(1, -1).astype(jnp.float32))
                 for (w, b) in body[1:]]

    def cat_heads(heads):
        Wc = jnp.concatenate([heads[k][0].astype(jnp.float32)
                              for k in key_order], axis=1)        # (F, 59)
        bc = jnp.concatenate([heads[k][1].astype(jnp.float32)
                              for k in key_order], axis=0)        # (59,)
        Wp = jnp.zeros((F, LANE), jnp.float32).at[:, :n_par].set(Wc)
        bp = jnp.zeros((1, LANE), jnp.float32).at[0, :n_par].set(bc)
        return Wp, bp

    wd, bd = cat_heads(module_params["delta_heads"])
    ww, bw = cat_heads(module_params["weight_heads"])
    # (the unused `shape_params` heads stay as dead weights, matching PyTorch)

    offsets, off = {}, 0
    for k in key_order:
        offsets[k] = off
        off += key_dims[k]

    return dict(w1p=w1p, w1l=w1l, b1=b1_adj.reshape(1, F),
                body_rest=body_rest, wd=wd, bd=bd, ww=ww, bw=bw,
                key_order=tuple(key_order), key_dims=dict(key_dims),
                key_offsets=offsets, n_params=n_par)


# ----------------------------------------------------------------------------
# Forward pass
# ----------------------------------------------------------------------------
def mlp_regularize_forward(fused, params, latent):
    key_order = fused["key_order"]
    n_par = fused["n_params"]
    B = latent.shape[0]
    M_pad = max(SUBLANE, ((B + SUBLANE - 1) // SUBLANE) * SUBLANE)

    # concat params (same order as the PyTorch forward) + sublane/lane padding.
    xp = jnp.concatenate([params[k].astype(jnp.float32) for k in key_order],
                         axis=-1)                                   # (B, 59)
    xp_pad = jnp.zeros((M_pad, LANE), jnp.float32).at[:B, :n_par].set(xp)

    # raw NCHW flatten of the latent (conv already folded into w1l).
    xl = latent.reshape(B, -1).astype(jnp.float32)                  # (B, C*H*W)
    xl_pad = jnp.zeros((M_pad, xl.shape[1]), jnp.float32).at[:B].set(xl)

    d_out, p_out, w_out = _fused_call(xp_pad, xl_pad, fused)

    deltas, priors, weights = {}, {}, {}
    for k in key_order:
        off = fused["key_offsets"][k]
        dim = fused["key_dims"][k]
        deltas[k] = d_out[:B, off:off + dim]
        priors[k] = p_out[:B, off:off + dim]
        weights[k] = w_out[:B, off:off + dim]
    return dict(priors=priors, deltas=deltas, weights=weights)


# ----------------------------------------------------------------------------
# Main
# ----------------------------------------------------------------------------
if __name__ == "__main__":
    # Small but structurally faithful configuration.
    cfg = dict(features=32, depth=2, latent_scale=4,
               unet_features=8, unet_depth=2, unet_size=32,
               expression_params=50, shape_params=16)
    B = 2

    key = jax.random.PRNGKey(0)
    k_mod, k_lat, k_e, k_t, k_g, k_n = jax.random.split(key, 6)

    module_params = build_module_params(k_mod, **cfg)
    meta = module_params["_meta"]

    latent = jax.random.normal(
        k_lat, (B, meta["ufeat"], meta["usize"], meta["usize"]), jnp.float32)

    # params total dim must equal 59 (hard-coded in the original module).
    params = dict(
        expression_params=jax.random.normal(k_e, (B, 50), jnp.float32),
        transl=jax.random.normal(k_t, (B, 3), jnp.float32),
        global_pose=jax.random.normal(k_g, (B, 3), jnp.float32),
        neck_pose=jax.random.normal(k_n, (B, 3), jnp.float32),
    )
    key_dims = {k: v.shape[-1] for k, v in params.items()}

    # One-time weight preparation (conv folding, head concat, padding).
    fused = prepare_fused_params(module_params, list(params.keys()), key_dims)

    out = mlp_regularize_forward(fused, params, latent)
    jax.block_until_ready(out)

    # light shape sanity checks
    for k, v in params.items():
        assert out["priors"][k].shape == v.shape
        assert out["deltas"][k].shape == v.shape
        assert out["weights"][k].shape == v.shape
    # priors == deltas + values (exact, computed in-kernel)
    for k, v in params.items():
        assert jnp.allclose(out["priors"][k], out["deltas"][k] + v, atol=1e-5)

    print("KERNEL_OK")
</pallas_src>

<mosaic_0001>
module attributes {stable_mosaic.version = 11 : i64} {
  func.func @_fused_kernel(%arg0: i32, %arg1: memref<8x128xf32, #tpu.memory_space<vmem>>, %arg2: memref<8x2048xf32, #tpu.memory_space<vmem>>, %arg3: memref<128x32xf32, #tpu.memory_space<vmem>>, %arg4: memref<2048x32xf32, #tpu.memory_space<vmem>>, %arg5: memref<1x32xf32, #tpu.memory_space<vmem>>, %arg6: memref<32x32xf32, #tpu.memory_space<vmem>>, %arg7: memref<1x32xf32, #tpu.memory_space<vmem>>, %arg8: memref<32x32xf32, #tpu.memory_space<vmem>>, %arg9: memref<1x32xf32, #tpu.memory_space<vmem>>, %arg10: memref<32x128xf32, #tpu.memory_space<vmem>>, %arg11: memref<1x128xf32, #tpu.memory_space<vmem>>, %arg12: memref<32x128xf32, #tpu.memory_space<vmem>>, %arg13: memref<1x128xf32, #tpu.memory_space<vmem>>, %arg14: memref<8x128xf32, #tpu.memory_space<vmem>>, %arg15: memref<8x128xf32, #tpu.memory_space<vmem>>, %arg16: memref<8x128xf32, #tpu.memory_space<vmem>>) attributes {dimension_semantics = [#tpu.dimension_semantics<arbitrary>], iteration_bounds = array<i64: 1>, scalar_prefetch = 0 : i64, scratch_operands = 0 : i64, tpu.core_type = #tpu.core_type<tc>, window_params = [{pipeline_mode = #tpu.pipeline_mode<synchronous>, transform_indices = @transform_0, window_bounds = array<i64: 8, 128>}, {pipeline_mode = #tpu.pipeline_mode<synchronous>, transform_indices = @transform_1, window_bounds = array<i64: 8, 2048>}, {pipeline_mode = #tpu.pipeline_mode<synchronous>, transform_indices = @transform_2, window_bounds = array<i64: 128, 32>}, {pipeline_mode = #tpu.pipeline_mode<synchronous>, transform_indices = @transform_3, window_bounds = array<i64: 2048, 32>}, {pipeline_mode = #tpu.pipeline_mode<synchronous>, transform_indices = @transform_4, window_bounds = array<i64: 1, 32>}, {pipeline_mode = #tpu.pipeline_mode<synchronous>, transform_indices = @transform_5, window_bounds = array<i64: 32, 32>}, {pipeline_mode = #tpu.pipeline_mode<synchronous>, transform_indices = @transform_6, window_bounds = array<i64: 1, 32>}, {pipeline_mode = #tpu.pipeline_mode<synchronous>, transform_indices = @transform_7, window_bounds = array<i64: 32, 32>}, {pipeline_mode = #tpu.pipeline_mode<synchronous>, transform_indices = @transform_8, window_bounds = array<i64: 1, 32>}, {pipeline_mode = #tpu.pipeline_mode<synchronous>, transform_indices = @transform_9, window_bounds = array<i64: 32, 128>}, {pipeline_mode = #tpu.pipeline_mode<synchronous>, transform_indices = @transform_10, window_bounds = array<i64: 1, 128>}, {pipeline_mode = #tpu.pipeline_mode<synchronous>, transform_indices = @transform_11, window_bounds = array<i64: 32, 128>}, {pipeline_mode = #tpu.pipeline_mode<synchronous>, transform_indices = @transform_12, window_bounds = array<i64: 1, 128>}, {pipeline_mode = #tpu.pipeline_mode<synchronous>, transform_indices = @transform_13, window_bounds = array<i64: 8, 128>}, {pipeline_mode = #tpu.pipeline_mode<synchronous>, transform_indices = @transform_14, window_bounds = array<i64: 8, 128>}, {pipeline_mode = #tpu.pipeline_mode<synchronous>, transform_indices = @transform_15, window_bounds = array<i64: 8, 128>}]} {
    %c0 = arith.constant 0 : index
    %c0_0 = arith.constant 0 : index
    %0 = vector.load %arg1[%c0, %c0_0] : memref<8x128xf32, #tpu.memory_space<vmem>>, vector<8x128xf32>
    %c0_1 = arith.constant 0 : index
    %c0_2 = arith.constant 0 : index
    %1 = vector.load %arg3[%c0_1, %c0_2] : memref<128x32xf32, #tpu.memory_space<vmem>>, vector<128x32xf32>
    %cst = arith.constant dense<0.000000e+00> : vector<8x32xf32>
    %2 = tpu.matmul %0, %1, %cst {dimension_numbers = #tpu.dot_dimension_numbers<[1], [0], [0], [1], [0, 0, 1, 1], [], []>} : vector<8x128xf32>, vector<128x32xf32>, vector<8x32xf32> -> vector<8x32xf32>
    %c0_3 = arith.constant 0 : index
    %c0_4 = arith.constant 0 : index
    %3 = vector.load %arg2[%c0_3, %c0_4] : memref<8x2048xf32, #tpu.memory_space<vmem>>, vector<8x2048xf32>
    %c0_5 = arith.constant 0 : index
    %c0_6 = arith.constant 0 : index
    %4 = vector.load %arg4[%c0_5, %c0_6] : memref<2048x32xf32, #tpu.memory_space<vmem>>, vector<2048x32xf32>
    %cst_7 = arith.constant dense<0.000000e+00> : vector<8x32xf32>
    %5 = tpu.matmul %3, %4, %cst_7 {dimension_numbers = #tpu.dot_dimension_numbers<[1], [0], [0], [1], [0, 0, 1, 1], [], []>} : vector<8x2048xf32>, vector<2048x32xf32>, vector<8x32xf32> -> vector<8x32xf32>
    %6 = arith.addf %2, %5 : vector<8x32xf32>
    %c0_8 = arith.constant 0 : index
    %c0_9 = arith.constant 0 : index
    %7 = vector.load %arg5[%c0_8, %c0_9] : memref<1x32xf32, #tpu.memory_space<vmem>>, vector<1x32xf32>
    %8 = vector.broadcast %7 : vector<1x32xf32> to vector<8x32xf32>
    %9 = arith.addf %6, %8 : vector<8x32xf32>
    %cst_10 = arith.constant 0.000000e+00 : f32
    %10 = vector.broadcast %cst_10 : f32 to vector<8x32xf32>
    %11 = arith.maximumf %9, %10 : vector<8x32xf32>
    %c0_11 = arith.constant 0 : index
    %c0_12 = arith.constant 0 : index
    %12 = vector.load %arg6[%c0_11, %c0_12] : memref<32x32xf32, #tpu.memory_space<vmem>>, vector<32x32xf32>
    %c0_13 = arith.constant 0 : index
    %c0_14 = arith.constant 0 : index
    %13 = vector.load %arg7[%c0_13, %c0_14] : memref<1x32xf32, #tpu.memory_space<vmem>>, vector<1x32xf32>
    %cst_15 = arith.constant dense<0.000000e+00> : vector<8x32xf32>
    %14 = tpu.matmul %11, %12, %cst_15 {dimension_numbers = #tpu.dot_dimension_numbers<[1], [0], [0], [1], [0, 0, 1, 1], [], []>} : vector<8x32xf32>, vector<32x32xf32>, vector<8x32xf32> -> vector<8x32xf32>
    %15 = vector.broadcast %13 : vector<1x32xf32> to vector<8x32xf32>
    %16 = arith.addf %14, %15 : vector<8x32xf32>
    %cst_16 = arith.constant 0.000000e+00 : f32
    %17 = vector.broadcast %cst_16 : f32 to vector<8x32xf32>
    %18 = arith.maximumf %16, %17 : vector<8x32xf32>
    %c0_17 = arith.constant 0 : index
    %c0_18 = arith.constant 0 : index
    %19 = vector.load %arg8[%c0_17, %c0_18] : memref<32x32xf32, #tpu.memory_space<vmem>>, vector<32x32xf32>
    %c0_19 = arith.constant 0 : index
    %c0_20 = arith.constant 0 : index
    %20 = vector.load %arg9[%c0_19, %c0_20] : memref<1x32xf32, #tpu.memory_space<vmem>>, vector<1x32xf32>
    %cst_21 = arith.constant dense<0.000000e+00> : vector<8x32xf32>
    %21 = tpu.matmul %18, %19, %cst_21 {dimension_numbers = #tpu.dot_dimension_numbers<[1], [0], [0], [1], [0, 0, 1, 1], [], []>} : vector<8x32xf32>, vector<32x32xf32>, vector<8x32xf32> -> vector<8x32xf32>
    %22 = vector.broadcast %20 : vector<1x32xf32> to vector<8x32xf32>
    %23 = arith.addf %21, %22 : vector<8x32xf32>
    %c0_22 = arith.constant 0 : index
    %c0_23 = arith.constant 0 : index
    %24 = vector.load %arg10[%c0_22, %c0_23] : memref<32x128xf32, #tpu.memory_space<vmem>>, vector<32x128xf32>
    %cst_24 = arith.constant dense<0.000000e+00> : vector<8x128xf32>
    %25 = tpu.matmul %23, %24, %cst_24 {dimension_numbers = #tpu.dot_dimension_numbers<[1], [0], [0], [1], [0, 0, 1, 1], [], []>} : vector<8x32xf32>, vector<32x128xf32>, vector<8x128xf32> -> vector<8x128xf32>
    %c0_25 = arith.constant 0 : index
    %c0_26 = arith.constant 0 : index
    %26 = vector.load %arg11[%c0_25, %c0_26] : memref<1x128xf32, #tpu.memory_space<vmem>>, vector<1x128xf32>
    %27 = vector.broadcast %26 : vector<1x128xf32> to vector<8x128xf32>
    %28 = arith.addf %25, %27 : vector<8x128xf32>
    %c0_27 = arith.constant 0 : index
    %c0_28 = arith.constant 0 : index
    %29 = vector.load %arg12[%c0_27, %c0_28] : memref<32x128xf32, #tpu.memory_space<vmem>>, vector<32x128xf32>
    %cst_29 = arith.constant dense<0.000000e+00> : vector<8x128xf32>
    %30 = tpu.matmul %23, %29, %cst_29 {dimension_numbers = #tpu.dot_dimension_numbers<[1], [0], [0], [1], [0, 0, 1, 1], [], []>} : vector<8x32xf32>, vector<32x128xf32>, vector<8x128xf32> -> vector<8x128xf32>
    %c0_30 = arith.constant 0 : index
    %c0_31 = arith.constant 0 : index
    %31 = vector.load %arg13[%c0_30, %c0_31] : memref<1x128xf32, #tpu.memory_space<vmem>>, vector<1x128xf32>
    %32 = vector.broadcast %31 : vector<1x128xf32> to vector<8x128xf32>
    %33 = arith.addf %30, %32 : vector<8x128xf32>
    %c0_32 = arith.constant 0 : index
    %c0_33 = arith.constant 0 : index
    %34 = vector.load %arg14[%c0_32, %c0_33] : memref<8x128xf32, #tpu.memory_space<vmem>>, vector<8x128xf32>
    tpu.vector_store %arg14[%c0_32, %c0_33], %28 {strides = array<i32>} : memref<8x128xf32, #tpu.memory_space<vmem>>, vector<8x128xf32>,
    %35 = arith.addf %28, %0 : vector<8x128xf32>
    %c0_34 = arith.constant 0 : index
    %c0_35 = arith.constant 0 : index
    %36 = vector.load %arg15[%c0_34, %c0_35] : memref<8x128xf32, #tpu.memory_space<vmem>>, vector<8x128xf32>
    tpu.vector_store %arg15[%c0_34, %c0_35], %35 {strides = array<i32>} : memref<8x128xf32, #tpu.memory_space<vmem>>, vector<8x128xf32>,
    %cst_36 = arith.constant 0.000000e+00 : f32
    %37 = vector.broadcast %cst_36 : f32 to vector<8x128xf32>
    %38 = arith.cmpf ogt, %33, %37 : vector<8x128xf32>
    %cst_37 = arith.constant 1.000000e+00 : f32
    %39 = vector.broadcast %cst_37 : f32 to vector<8x128xf32>
    %40 = arith.addf %33, %39 : vector<8x128xf32>
    %41 = math.exp %33 : vector<8x128xf32>
    %42 = arith.select %38, %40, %41 : vector<8x128xi1>, vector<8x128xf32>
    %c0_38 = arith.constant 0 : index
    %c0_39 = arith.constant 0 : index
    %43 = vector.load %arg16[%c0_38, %c0_39] : memref<8x128xf32, #tpu.memory_space<vmem>>, vector<8x128xf32>
    tpu.vector_store %arg16[%c0_38, %c0_39], %42 {strides = array<i32>} : memref<8x128xf32, #tpu.memory_space<vmem>>, vector<8x128xf32>,
    return
  }
  func.func @transform_0(%arg0: i32) -> (i32, i32) {
    %c0_i32 = arith.constant 0 : i32
    %c0_i32_0 = arith.constant 0 : i32
    %c0_i32_1 = arith.constant 0 : i32
    return %c0_i32, %c0_i32_0 : i32, i32
  }
  func.func @transform_1(%arg0: i32) -> (i32, i32) {
    %c0_i32 = arith.constant 0 : i32
    %c0_i32_0 = arith.constant 0 : i32
    %c0_i32_1 = arith.constant 0 : i32
    return %c0_i32, %c0_i32_0 : i32, i32
  }
  func.func @transform_2(%arg0: i32) -> (i32, i32) {
    %c0_i32 = arith.constant 0 : i32
    %c0_i32_0 = arith.constant 0 : i32
    %c0_i32_1 = arith.constant 0 : i32
    return %c0_i32, %c0_i32_0 : i32, i32
  }
  func.func @transform_3(%arg0: i32) -> (i32, i32) {
    %c0_i32 = arith.constant 0 : i32
    %c0_i32_0 = arith.constant 0 : i32
    %c0_i32_1 = arith.constant 0 : i32
    return %c0_i32, %c0_i32_0 : i32, i32
  }
  func.func @transform_4(%arg0: i32) -> (i32, i32) {
    %c0_i32 = arith.constant 0 : i32
    %c0_i32_0 = arith.constant 0 : i32
    %c0_i32_1 = arith.constant 0 : i32
    return %c0_i32, %c0_i32_0 : i32, i32
  }
  func.func @transform_5(%arg0: i32) -> (i32, i32) {
    %c0_i32 = arith.constant 0 : i32
    %c0_i32_0 = arith.constant 0 : i32
    %c0_i32_1 = arith.constant 0 : i32
    return %c0_i32, %c0_i32_0 : i32, i32
  }
  func.func @transform_6(%arg0: i32) -> (i32, i32) {
    %c0_i32 = arith.constant 0 : i32
    %c0_i32_0 = arith.constant 0 : i32
    %c0_i32_1 = arith.constant 0 : i32
    return %c0_i32, %c0_i32_0 : i32, i32
  }
  func.func @transform_7(%arg0: i32) -> (i32, i32) {
    %c0_i32 = arith.constant 0 : i32
    %c0_i32_0 = arith.constant 0 : i32
    %c0_i32_1 = arith.constant 0 : i32
    return %c0_i32, %c0_i32_0 : i32, i32
  }
  func.func @transform_8(%arg0: i32) -> (i32, i32) {
    %c0_i32 = arith.constant 0 : i32
    %c0_i32_0 = arith.constant 0 : i32
    %c0_i32_1 = arith.constant 0 : i32
    return %c0_i32, %c0_i32_0 : i32, i32
  }
  func.func @transform_9(%arg0: i32) -> (i32, i32) {
    %c0_i32 = arith.constant 0 : i32
    %c0_i32_0 = arith.constant 0 : i32
    %c0_i32_1 = arith.constant 0 : i32
    return %c0_i32, %c0_i32_0 : i32, i32
  }
  func.func @transform_10(%arg0: i32) -> (i32, i32) {
    %c0_i32 = arith.constant 0 : i32
    %c0_i32_0 = arith.constant 0 : i32
    %c0_i32_1 = arith.constant 0 : i32
    return %c0_i32, %c0_i32_0 : i32, i32
  }
  func.func @transform_11(%arg0: i32) -> (i32, i32) {
    %c0_i32 = arith.constant 0 : i32
    %c0_i32_0 = arith.constant 0 : i32
    %c0_i32_1 = arith.constant 0 : i32
    return %c0_i32, %c0_i32_0 : i32, i32
  }
  func.func @transform_12(%arg0: i32) -> (i32, i32) {
    %c0_i32 = arith.constant 0 : i32
    %c0_i32_0 = arith.constant 0 : i32
    %c0_i32_1 = arith.constant 0 : i32
    return %c0_i32, %c0_i32_0 : i32, i32
  }
  func.func @transform_13(%arg0: i32) -> (i32, i32) {
    %c0_i32 = arith.constant 0 : i32
    %c0_i32_0 = arith.constant 0 : i32
    %c0_i32_1 = arith.constant 0 : i32
    return %c0_i32, %c0_i32_0 : i32, i32
  }
  func.func @transform_14(%arg0: i32) -> (i32, i32) {
    %c0_i32 = arith.constant 0 : i32
    %c0_i32_0 = arith.constant 0 : i32
    %c0_i32_1 = arith.constant 0 : i32
    return %c0_i32, %c0_i32_0 : i32, i32
  }
  func.func @transform_15(%arg0: i32) -> (i32, i32) {
    %c0_i32 = arith.constant 0 : i32
    %c0_i32_0 = arith.constant 0 : i32
    %c0_i32_1 = arith.constant 0 : i32
    return %c0_i32, %c0_i32_0 : i32, i32
  }
}

</mosaic_0001>

<llo_original>
// kernel: tpu_custom_call.1
$region0: #{tpu_custom_call.1}
  #allocation0 [shape = 'u32[]', space=smem, size = 0x4, offset = 0x4, fixed_abs, tag = 'smem constant byte address 0x4 - core index']
  #allocation1 [shape = 'u32[72,128]{1,0:T(1,128)}', space=vmem, size = 0x9000, scoped, tag = 'internal scratch']
  %s0 = inlined_call_operand.vmem [shape: f32[8,128], index: 0, kind: input, shape index: {}]
  %s1 = inlined_call_operand.vmem [shape: f32[8,2048], index: 1, kind: input, shape index: {}]
  %s2 = inlined_call_operand.vmem [shape: f32[128,32], index: 2, kind: input, shape index: {}]
  %s3 = inlined_call_operand.vmem [shape: f32[2048,32], index: 3, kind: input, shape index: {}]
  %s4 = inlined_call_operand.vmem [shape: f32[1,32], index: 4, kind: input, shape index: {}]
  %s5 = inlined_call_operand.vmem [shape: f32[32,32], index: 5, kind: input, shape index: {}]
  %s6 = inlined_call_operand.vmem [shape: f32[1,32], index: 6, kind: input, shape index: {}]
  %s7 = inlined_call_operand.vmem [shape: f32[32,32], index: 7, kind: input, shape index: {}]
  %s8 = inlined_call_operand.vmem [shape: f32[1,32], index: 8, kind: input, shape index: {}]
  %s9 = inlined_call_operand.vmem [shape: f32[32,128], index: 9, kind: input, shape index: {}]
  %s10 = inlined_call_operand.vmem [shape: f32[1,128], index: 10, kind: input, shape index: {}]
  %s11 = inlined_call_operand.vmem [shape: f32[32,128], index: 11, kind: input, shape index: {}]
  %s12 = inlined_call_operand.vmem [shape: f32[1,128], index: 12, kind: input, shape index: {}]
  %s13 = inlined_call_operand.hbm [shape: f32[8,128], index: 13, kind: output, shape index: {0}]
  %s14 = inlined_call_operand.hbm [shape: f32[8,128], index: 14, kind: output, shape index: {1}]
  %s15 = inlined_call_operand.hbm [shape: f32[8,128], index: 15, kind: output, shape index: {2}]
  %16 = xla_tuple %s13, %s14, %s15
  %s17 = sld [smem:[#allocation0]]
  $region78: #{tpu_custom_call.1} parent=0
    _
  %s19 = ssub.s32 1, %s17
  %s20 = scalar_select 0, %s19, %s17
  $region1: #{tpu_custom_call.1} parent=0
    #allocation2 [shape = 'u8[4096]{0}', space=vmem, size = 0x1000, scoped, tag = 'output window, operand 0, single buffered']
    #allocation3 [shape = 's32[1]{0}', space=sflag, size = 0x4, scoped, tag = 'scoped memory for tpu_custom_call.1']
    #allocation4 [shape = 'u8[4096]{0}', space=vmem, size = 0x1000, scoped, tag = 'output window, operand 1, single buffered']
    #allocation5 [shape = 's32[1]{0}', space=sflag, size = 0x4, scoped, tag = 'scoped memory for tpu_custom_call.1']
    #allocation6 [shape = 'u8[4096]{0}', space=vmem, size = 0x1000, scoped, tag = 'output window, operand 2, single buffered']
    %21 = vsyncpa [#allocation3], 0
    %22 = vsyncpa [#allocation5], 0
    // Predicated region
    $region2: #{tpu_custom_call.1} parent=1 // pred_check
      _
    $region3: #{tpu_custom_call.1} parent=1 // pred_check_branch
      %24 = sbr.rel (0) target = $region5
    $region4: #{tpu_custom_call.1} parent=1 // pred_region
      _
    $region5: #{tpu_custom_call.1} parent=1 // pred_fallthru
      _
    // Predicated region
    $region6: #{tpu_custom_call.1} parent=1 // pred_check
      _
    $region7: #{tpu_custom_call.1} parent=1 // pred_check_branch
      %26 = sbr.rel (0) target = $region9
    $region8: #{tpu_custom_call.1} parent=1 // pred_region
      _
    $region9: #{tpu_custom_call.1} parent=1 // pred_fallthru
      _
    // Predicated region
    $region10: #{tpu_custom_call.1} parent=1 // pred_check
      _
    $region11: #{tpu_custom_call.1} parent=1 // pred_check_branch
      %28 = sbr.rel (0) target = $region13
    $region12: #{tpu_custom_call.1} parent=1 // pred_region
      _
    $region13: #{tpu_custom_call.1} parent=1 // pred_fallthru
      _
    // Predicated region
    $region14: #{tpu_custom_call.1} parent=1 // pred_check
      _
    $region15: #{tpu_custom_call.1} parent=1 // pred_check_branch
      %30 = sbr.rel (0) target = $region17
    $region16: #{tpu_custom_call.1} parent=1 // pred_region
      _
    $region17: #{tpu_custom_call.1} parent=1 // pred_fallthru
      _
    // Predicated region
    $region18: #{tpu_custom_call.1} parent=1 // pred_check
      _
    $region19: #{tpu_custom_call.1} parent=1 // pred_check_branch
      %32 = sbr.rel (0) target = $region21
    $region20: #{tpu_custom_call.1} parent=1 // pred_region
      _
    $region21: #{tpu_custom_call.1} parent=1 // pred_fallthru
      _
    // Predicated region
    $region22: #{tpu_custom_call.1} parent=1 // pred_check
      _
    $region23: #{tpu_custom_call.1} parent=1 // pred_check_branch
      %34 = sbr.rel (0) target = $region25
    $region24: #{tpu_custom_call.1} parent=1 // pred_region
      _
    $region25: #{tpu_custom_call.1} parent=1 // pred_fallthru
      _
    // Predicated region
    $region26: #{tpu_custom_call.1} parent=1 // pred_check
      _
    $region27: #{tpu_custom_call.1} parent=1 // pred_check_branch
      %36 = sbr.rel (0) target = $region29
    $region28: #{tpu_custom_call.1} parent=1 // pred_region
      _
    $region29: #{tpu_custom_call.1} parent=1 // pred_fallthru
      _
    // Predicated region
    $region30: #{tpu_custom_call.1} parent=1 // pred_check
      _
    $region31: #{tpu_custom_call.1} parent=1 // pred_check_branch
      %38 = sbr.rel (0) target = $region33
    $region32: #{tpu_custom_call.1} parent=1 // pred_region
      _
    $region33: #{tpu_custom_call.1} parent=1 // pred_fallthru
      _
    // Predicated region
    $region34: #{tpu_custom_call.1} parent=1 // pred_check
      _
    $region35: #{tpu_custom_call.1} parent=1 // pred_check_branch
      %40 = sbr.rel (0) target = $region37
    $region36: #{tpu_custom_call.1} parent=1 // pred_region
      _
    $region37: #{tpu_custom_call.1} parent=1 // pred_fallthru
      _
    // Predicated region
    $region38: #{tpu_custom_call.1} parent=1 // pred_check
      _
    $region39: #{tpu_custom_call.1} parent=1 // pred_check_branch
      %42 = sbr.rel (0) target = $region41
    $region40: #{tpu_custom_call.1} parent=1 // pred_region
      _
    $region41: #{tpu_custom_call.1} parent=1 // pred_fallthru
      _
    // Predicated region
    $region42: #{tpu_custom_call.1} parent=1 // pred_check
      _
    $region43: #{tpu_custom_call.1} parent=1 // pred_check_branch
      %44 = sbr.rel (0) target = $region45
    $region44: #{tpu_custom_call.1} parent=1 // pred_region
      _
    $region45: #{tpu_custom_call.1} parent=1 // pred_fallthru
      _
    // Predicated region
    $region46: #{tpu_custom_call.1} parent=1 // pred_check
      _
    $region47: #{tpu_custom_call.1} parent=1 // pred_check_branch
      %46 = sbr.rel (0) target = $region49
    $region48: #{tpu_custom_call.1} parent=1 // pred_region
      _
    $region49: #{tpu_custom_call.1} parent=1 // pred_fallthru
      _
    // Predicated region
    $region50: #{tpu_custom_call.1} parent=1 // pred_check
      _
    $region51: #{tpu_custom_call.1} parent=1 // pred_check_branch
      %48 = sbr.rel (0) target = $region53
    $region52: #{tpu_custom_call.1} parent=1 // pred_region
      _
    $region53: #{tpu_custom_call.1} parent=1 // pred_fallthru
      _
    %v49 = vld [vmem:[%s0] sm:$0xff]
    %v50 = vld [vmem:[%s2] sm:$0xff]
    %v51 = vld [vmem:[%s2 + $0x8] sm:$0xff]
    %v52 = vld [vmem:[%s2 + $0x10] sm:$0xff]
    %v53 = vld [vmem:[%s2 + $0x18] sm:$0xff]
    %v54 = vld [vmem:[%s2 + $0x20] sm:$0xff]
    %v55 = vld [vmem:[%s2 + $0x28] sm:$0xff]
    %v56 = vld [vmem:[%s2 + $0x30] sm:$0xff]
    %v57 = vld [vmem:[%s2 + $0x38] sm:$0xff]
    %v58 = vld [vmem:[%s2 + $0x40] sm:$0xff]
    %v59 = vld [vmem:[%s2 + $0x48] sm:$0xff]
    %v60 = vld [vmem:[%s2 + $0x50] sm:$0xff]
    %v61 = vld [vmem:[%s2 + $0x58] sm:$0xff]
    %v62 = vld [vmem:[%s2 + $0x60] sm:$0xff]
    %v63 = vld [vmem:[%s2 + $0x68] sm:$0xff]
    %v64 = vld [vmem:[%s2 + $0x70] sm:$0xff]
    %v65 = vld [vmem:[%s2 + $0x78] sm:$0xff]
    %v66 = vld [vmem:[%s1] sm:$0xff]
    %v67 = vld [vmem:[%s1 + $0x8] sm:$0xff]
    %v68 = vld [vmem:[%s1 + $0x10] sm:$0xff]
    %v69 = vld [vmem:[%s1 + $0x18] sm:$0xff]
    %v70 = vld [vmem:[%s1 + $0x20] sm:$0xff]
    %v71 = vld [vmem:[%s1 + $0x28] sm:$0xff]
    %v72 = vld [vmem:[%s1 + $0x30] sm:$0xff]
    %v73 = vld [vmem:[%s1 + $0x38] sm:$0xff]
    %v74 = vld [vmem:[%s1 + $0x40] sm:$0xff]
    %v75 = vld [vmem:[%s1 + $0x48] sm:$0xff]
    %v76 = vld [vmem:[%s1 + $0x50] sm:$0xff]
    %v77 = vld [vmem:[%s1 + $0x58] sm:$0xff]
    %v78 = vld [vmem:[%s1 + $0x60] sm:$0xff]
    %v79 = vld [vmem:[%s1 + $0x68] sm:$0xff]
    %v80 = vld [vmem:[%s1 + $0x70] sm:$0xff]
    %v81 = vld [vmem:[%s1 + $0x78] sm:$0xff]
    %v82 = vld [vmem:[%s3] sm:$0xff]
    %v83 = vld [vmem:[%s3 + $0x8] sm:$0xff]
    %v84 = vld [vmem:[%s3 + $0x10] sm:$0xff]
    %v85 = vld [vmem:[%s3 + $0x18] sm:$0xff]
    %v86 = vld [vmem:[%s3 + $0x20] sm:$0xff]
    %v87 = vld [vmem:[%s3 + $0x28] sm:$0xff]
    %v88 = vld [vmem:[%s3 + $0x30] sm:$0xff]
    %v89 = vld [vmem:[%s3 + $0x38] sm:$0xff]
    %v90 = vld [vmem:[%s3 + $0x40] sm:$0xff]
    %v91 = vld [vmem:[%s3 + $0x48] sm:$0xff]
    %v92 = vld [vmem:[%s3 + $0x50] sm:$0xff]
    %v93 = vld [vmem:[%s3 + $0x58] sm:$0xff]
    %v94 = vld [vmem:[%s3 + $0x60] sm:$0xff]
    %v95 = vld [vmem:[%s3 + $0x68] sm:$0xff]
    %v96 = vld [vmem:[%s3 + $0x70] sm:$0xff]
    %v97 = vld [vmem:[%s3 + $0x78] sm:$0xff]
    %v98 = vld [vmem:[%s3 + $0x80] sm:$0xff]
    %v99 = vld [vmem:[%s3 + $0x88] sm:$0xff]
    %v100 = vld [vmem:[%s3 + $0x90] sm:$0xff]
    %v101 = vld [vmem:[%s3 + $0x98] sm:$0xff]
    %v102 = vld [vmem:[%s3 + $0xa0] sm:$0xff]
    %v103 = vld [vmem:[%s3 + $0xa8] sm:$0xff]
    %v104 = vld [vmem:[%s3 + $0xb0] sm:$0xff]
    %v105 = vld [vmem:[%s3 + $0xb8] sm:$0xff]
    %v106 = vld [vmem:[%s3 + $0xc0] sm:$0xff]
    %v107 = vld [vmem:[%s3 + $0xc8] sm:$0xff]
    %v108 = vld [vmem:[%s3 + $0xd0] sm:$0xff]
    %v109 = vld [vmem:[%s3 + $0xd8] sm:$0xff]
    %v110 = vld [vmem:[%s3 + $0xe0] sm:$0xff]
    %v111 = vld [vmem:[%s3 + $0xe8] sm:$0xff]
    %v112 = vld [vmem:[%s3 + $0xf0] sm:$0xff]
    %v113 = vld [vmem:[%s3 + $0xf8] sm:$0xff]
    %v114 = vld [vmem:[%s3 + $0x100] sm:$0xff]
    %v115 = vld [vmem:[%s3 + $0x108] sm:$0xff]
    %v116 = vld [vmem:[%s3 + $0x110] sm:$0xff]
    %v117 = vld [vmem:[%s3 + $0x118] sm:$0xff]
    %v118 = vld [vmem:[%s3 + $0x120] sm:$0xff]
    %v119 = vld [vmem:[%s3 + $0x128] sm:$0xff]
    %v120 = vld [vmem:[%s3 + $0x130] sm:$0xff]
    %v121 = vld [vmem:[%s3 + $0x138] sm:$0xff]
    %v122 = vld [vmem:[%s3 + $0x140] sm:$0xff]
    %v123 = vld [vmem:[%s3 + $0x148] sm:$0xff]
    %v124 = vld [vmem:[%s3 + $0x150] sm:$0xff]
    %v125 = vld [vmem:[%s3 + $0x158] sm:$0xff]
    %v126 = vld [vmem:[%s3 + $0x160] sm:$0xff]
    %v127 = vld [vmem:[%s3 + $0x168] sm:$0xff]
    %v128 = vld [vmem:[%s3 + $0x170] sm:$0xff]
    %v129 = vld [vmem:[%s3 + $0x178] sm:$0xff]
    %v130 = vld [vmem:[%s3 + $0x180] sm:$0xff]
    %v131 = vld [vmem:[%s3 + $0x188] sm:$0xff]
    %v132 = vld [vmem:[%s3 + $0x190] sm:$0xff]
    %v133 = vld [vmem:[%s3 + $0x198] sm:$0xff]
    %v134 = vld [vmem:[%s3 + $0x1a0] sm:$0xff]
    %v135 = vld [vmem:[%s3 + $0x1a8] sm:$0xff]
    %v136 = vld [vmem:[%s3 + $0x1b0] sm:$0xff]
    %v137 = vld [vmem:[%s3 + $0x1b8] sm:$0xff]
    %v138 = vld [vmem:[%s3 + $0x1c0] sm:$0xff]
    %v139 = vld [vmem:[%s3 + $0x1c8] sm:$0xff]
    %v140 = vld [vmem:[%s3 + $0x1d0] sm:$0xff]
    %v141 = vld [vmem:[%s3 + $0x1d8] sm:$0xff]
    %v142 = vld [vmem:[%s3 + $0x1e0] sm:$0xff]
    %v143 = vld [vmem:[%s3 + $0x1e8] sm:$0xff]
    %v144 = vld [vmem:[%s3 + $0x1f0] sm:$0xff]
    %v145 = vld [vmem:[%s3 + $0x1f8] sm:$0xff]
    %v146 = vld [vmem:[%s3 + $0x200] sm:$0xff]
    %v147 = vld [vmem:[%s3 + $0x208] sm:$0xff]
    %v148 = vld [vmem:[%s3 + $0x210] sm:$0xff]
    %v149 = vld [vmem:[%s3 + $0x218] sm:$0xff]
    %v150 = vld [vmem:[%s3 + $0x220] sm:$0xff]
    %v151 = vld [vmem:[%s3 + $0x228] sm:$0xff]
    %v152 = vld [vmem:[%s3 + $0x230] sm:$0xff]
    %v153 = vld [vmem:[%s3 + $0x238] sm:$0xff]
    %v154 = vld [vmem:[%s3 + $0x240] sm:$0xff]
    %v155 = vld [vmem:[%s3 + $0x248] sm:$0xff]
    %v156 = vld [vmem:[%s3 + $0x250] sm:$0xff]
    %v157 = vld [vmem:[%s3 + $0x258] sm:$0xff]
    %v158 = vld [vmem:[%s3 + $0x260] sm:$0xff]
    %v159 = vld [vmem:[%s3 + $0x268] sm:$0xff]
    %v160 = vld [vmem:[%s3 + $0x270] sm:$0xff]
    %v161 = vld [vmem:[%s3 + $0x278] sm:$0xff]
    %v162 = vld [vmem:[%s3 + $0x280] sm:$0xff]
    %v163 = vld [vmem:[%s3 + $0x288] sm:$0xff]
    %v164 = vld [vmem:[%s3 + $0x290] sm:$0xff]
    %v165 = vld [vmem:[%s3 + $0x298] sm:$0xff]
    %v166 = vld [vmem:[%s3 + $0x2a0] sm:$0xff]
    %v167 = vld [vmem:[%s3 + $0x2a8] sm:$0xff]
    %v168 = vld [vmem:[%s3 + $0x2b0] sm:$0xff]
    %v169 = vld [vmem:[%s3 + $0x2b8] sm:$0xff]
    %v170 = vld [vmem:[%s3 + $0x2c0] sm:$0xff]
    %v171 = vld [vmem:[%s3 + $0x2c8] sm:$0xff]
    %v172 = vld [vmem:[%s3 + $0x2d0] sm:$0xff]
    %v173 = vld [vmem:[%s3 + $0x2d8] sm:$0xff]
    %v174 = vld [vmem:[%s3 + $0x2e0] sm:$0xff]
    %v175 = vld [vmem:[%s3 + $0x2e8] sm:$0xff]
    %v176 = vld [vmem:[%s3 + $0x2f0] sm:$0xff]
    %v177 = vld [vmem:[%s3 + $0x2f8] sm:$0xff]
    %v178 = vld [vmem:[%s3 + $0x300] sm:$0xff]
    %v179 = vld [vmem:[%s3 + $0x308] sm:$0xff]
    %v180 = vld [vmem:[%s3 + $0x310] sm:$0xff]
    %v181 = vld [vmem:[%s3 + $0x318] sm:$0xff]
    %v182 = vld [vmem:[%s3 + $0x320] sm:$0xff]
    %v183 = vld [vmem:[%s3 + $0x328] sm:$0xff]
    %v184 = vld [vmem:[%s3 + $0x330] sm:$0xff]
    %v185 = vld [vmem:[%s3 + $0x338] sm:$0xff]
    %v186 = vld [vmem:[%s3 + $0x340] sm:$0xff]
    %v187 = vld [vmem:[%s3 + $0x348] sm:$0xff]
    %v188 = vld [vmem:[%s3 + $0x350] sm:$0xff]
    %v189 = vld [vmem:[%s3 + $0x358] sm:$0xff]
    %v190 = vld [vmem:[%s3 + $0x360] sm:$0xff]
    %v191 = vld [vmem:[%s3 + $0x368] sm:$0xff]
    %v192 = vld [vmem:[%s3 + $0x370] sm:$0xff]
    %v193 = vld [vmem:[%s3 + $0x378] sm:$0xff]
    %v194 = vld [vmem:[%s3 + $0x380] sm:$0xff]
    %v195 = vld [vmem:[%s3 + $0x388] sm:$0xff]
    %v196 = vld [vmem:[%s3 + $0x390] sm:$0xff]
    %v197 = vld [vmem:[%s3 + $0x398] sm:$0xff]
    %v198 = vld [vmem:[%s3 + $0x3a0] sm:$0xff]
    %v199 = vld [vmem:[%s3 + $0x3a8] sm:$0xff]
    %v200 = vld [vmem:[%s3 + $0x3b0] sm:$0xff]
    %v201 = vld [vmem:[%s3 + $0x3b8] sm:$0xff]
    %v202 = vld [vmem:[%s3 + $0x3c0] sm:$0xff]
    %v203 = vld [vmem:[%s3 + $0x3c8] sm:$0xff]
    %v204 = vld [vmem:[%s3 + $0x3d0] sm:$0xff]
    %v205 = vld [vmem:[%s3 + $0x3d8] sm:$0xff]
    %v206 = vld [vmem:[%s3 + $0x3e0] sm:$0xff]
    %v207 = vld [vmem:[%s3 + $0x3e8] sm:$0xff]
    %v208 = vld [vmem:[%s3 + $0x3f0] sm:$0xff]
    %v209 = vld [vmem:[%s3 + $0x3f8] sm:$0xff]
    %v210 = vld [vmem:[%s3 + $0x400] sm:$0xff]
    %v211 = vld [vmem:[%s3 + $0x408] sm:$0xff]
    %v212 = vld [vmem:[%s3 + $0x410] sm:$0xff]
    %v213 = vld [vmem:[%s3 + $0x418] sm:$0xff]
    %v214 = vld [vmem:[%s3 + $0x420] sm:$0xff]
    %v215 = vld [vmem:[%s3 + $0x428] sm:$0xff]
    %v216 = vld [vmem:[%s3 + $0x430] sm:$0xff]
    %v217 = vld [vmem:[%s3 + $0x438] sm:$0xff]
    %v218 = vld [vmem:[%s3 + $0x440] sm:$0xff]
    %v219 = vld [vmem:[%s3 + $0x448] sm:$0xff]
    %v220 = vld [vmem:[%s3 + $0x450] sm:$0xff]
    %v221 = vld [vmem:[%s3 + $0x458] sm:$0xff]
    %v222 = vld [vmem:[%s3 + $0x460] sm:$0xff]
    %v223 = vld [vmem:[%s3 + $0x468] sm:$0xff]
    %v224 = vld [vmem:[%s3 + $0x470] sm:$0xff]
    %v225 = vld [vmem:[%s3 + $0x478] sm:$0xff]
    %v226 = vld [vmem:[%s3 + $0x480] sm:$0xff]
    %v227 = vld [vmem:[%s3 + $0x488] sm:$0xff]
    %v228 = vld [vmem:[%s3 + $0x490] sm:$0xff]
    %v229 = vld [vmem:[%s3 + $0x498] sm:$0xff]
    %v230 = vld [vmem:[%s3 + $0x4a0] sm:$0xff]
    %v231 = vld [vmem:[%s3 + $0x4a8] sm:$0xff]
    %v232 = vld [vmem:[%s3 + $0x4b0] sm:$0xff]
    %v233 = vld [vmem:[%s3 + $0x4b8] sm:$0xff]
    %v234 = vld [vmem:[%s3 + $0x4c0] sm:$0xff]
    %v235 = vld [vmem:[%s3 + $0x4c8] sm:$0xff]
    %v236 = vld [vmem:[%s3 + $0x4d0] sm:$0xff]
    %v237 = vld [vmem:[%s3 + $0x4d8] sm:$0xff]
    %v238 = vld [vmem:[%s3 + $0x4e0] sm:$0xff]
    %v239 = vld [vmem:[%s3 + $0x4e8] sm:$0xff]
    %v240 = vld [vmem:[%s3 + $0x4f0] sm:$0xff]
    %v241 = vld [vmem:[%s3 + $0x4f8] sm:$0xff]
    %v242 = vld [vmem:[%s3 + $0x500] sm:$0xff]
    %v243 = vld [vmem:[%s3 + $0x508] sm:$0xff]
    %v244 = vld [vmem:[%s3 + $0x510] sm:$0xff]
    %v245 = vld [vmem:[%s3 + $0x518] sm:$0xff]
    %v246 = vld [vmem:[%s3 + $0x520] sm:$0xff]
    %v247 = vld [vmem:[%s3 + $0x528] sm:$0xff]
    %v248 = vld [vmem:[%s3 + $0x530] sm:$0xff]
    %v249 = vld [vmem:[%s3 + $0x538] sm:$0xff]
    %v250 = vld [vmem:[%s3 + $0x540] sm:$0xff]
    %v251 = vld [vmem:[%s3 + $0x548] sm:$0xff]
    %v252 = vld [vmem:[%s3 + $0x550] sm:$0xff]
    %v253 = vld [vmem:[%s3 + $0x558] sm:$0xff]
    %v254 = vld [vmem:[%s3 + $0x560] sm:$0xff]
    %v255 = vld [vmem:[%s3 + $0x568] sm:$0xff]
    %v256 = vld [vmem:[%s3 + $0x570] sm:$0xff]
    %v257 = vld [vmem:[%s3 + $0x578] sm:$0xff]
    %v258 = vld [vmem:[%s3 + $0x580] sm:$0xff]
    %v259 = vld [vmem:[%s3 + $0x588] sm:$0xff]
    %v260 = vld [vmem:[%s3 + $0x590] sm:$0xff]
    %v261 = vld [vmem:[%s3 + $0x598] sm:$0xff]
    %v262 = vld [vmem:[%s3 + $0x5a0] sm:$0xff]
    %v263 = vld [vmem:[%s3 + $0x5a8] sm:$0xff]
    %v264 = vld [vmem:[%s3 + $0x5b0] sm:$0xff]
    %v265 = vld [vmem:[%s3 + $0x5b8] sm:$0xff]
    %v266 = vld [vmem:[%s3 + $0x5c0] sm:$0xff]
    %v267 = vld [vmem:[%s3 + $0x5c8] sm:$0xff]
    %v268 = vld [vmem:[%s3 + $0x5d0] sm:$0xff]
    %v269 = vld [vmem:[%s3 + $0x5d8] sm:$0xff]
    %v270 = vld [vmem:[%s3 + $0x5e0] sm:$0xff]
    %v271 = vld [vmem:[%s3 + $0x5e8] sm:$0xff]
    %v272 = vld [vmem:[%s3 + $0x5f0] sm:$0xff]
    %v273 = vld [vmem:[%s3 + $0x5f8] sm:$0xff]
    %v274 = vld [vmem:[%s3 + $0x600] sm:$0xff]
    %v275 = vld [vmem:[%s3 + $0x608] sm:$0xff]
    %v276 = vld [vmem:[%s3 + $0x610] sm:$0xff]
    %v277 = vld [vmem:[%s3 + $0x618] sm:$0xff]
    %v278 = vld [vmem:[%s3 + $0x620] sm:$0xff]
    %v279 = vld [vmem:[%s3 + $0x628] sm:$0xff]
    %v280 = vld [vmem:[%s3 + $0x630] sm:$0xff]
    %v281 = vld [vmem:[%s3 + $0x638] sm:$0xff]
    %v282 = vld [vmem:[%s3 + $0x640] sm:$0xff]
    %v283 = vld [vmem:[%s3 + $0x648] sm:$0xff]
    %v284 = vld [vmem:[%s3 + $0x650] sm:$0xff]
    %v285 = vld [vmem:[%s3 + $0x658] sm:$0xff]
    %v286 = vld [vmem:[%s3 + $0x660] sm:$0xff]
    %v287 = vld [vmem:[%s3 + $0x668] sm:$0xff]
    %v288 = vld [vmem:[%s3 + $0x670] sm:$0xff]
    %v289 = vld [vmem:[%s3 + $0x678] sm:$0xff]
    %v290 = vld [vmem:[%s3 + $0x680] sm:$0xff]
    %v291 = vld [vmem:[%s3 + $0x688] sm:$0xff]
    %v292 = vld [vmem:[%s3 + $0x690] sm:$0xff]
    %v293 = vld [vmem:[%s3 + $0x698] sm:$0xff]
    %v294 = vld [vmem:[%s3 + $0x6a0] sm:$0xff]
    %v295 = vld [vmem:[%s3 + $0x6a8] sm:$0xff]
    %v296 = vld [vmem:[%s3 + $0x6b0] sm:$0xff]
    %v297 = vld [vmem:[%s3 + $0x6b8] sm:$0xff]
    %v298 = vld [vmem:[%s3 + $0x6c0] sm:$0xff]
    %v299 = vld [vmem:[%s3 + $0x6c8] sm:$0xff]
    %v300 = vld [vmem:[%s3 + $0x6d0] sm:$0xff]
    %v301 = vld [vmem:[%s3 + $0x6d8] sm:$0xff]
    %v302 = vld [vmem:[%s3 + $0x6e0] sm:$0xff]
    %v303 = vld [vmem:[%s3 + $0x6e8] sm:$0xff]
    %v304 = vld [vmem:[%s3 + $0x6f0] sm:$0xff]
    %v305 = vld [vmem:[%s3 + $0x6f8] sm:$0xff]
    %v306 = vld [vmem:[%s3 + $0x700] sm:$0xff]
    %v307 = vld [vmem:[%s3 + $0x708] sm:$0xff]
    %v308 = vld [vmem:[%s3 + $0x710] sm:$0xff]
    %v309 = vld [vmem:[%s3 + $0x718] sm:$0xff]
    %v310 = vld [vmem:[%s3 + $0x720] sm:$0xff]
    %v311 = vld [vmem:[%s3 + $0x728] sm:$0xff]
    %v312 = vld [vmem:[%s3 + $0x730] sm:$0xff]
    %v313 = vld [vmem:[%s3 + $0x738] sm:$0xff]
    %v314 = vld [vmem:[%s3 + $0x740] sm:$0xff]
    %v315 = vld [vmem:[%s3 + $0x748] sm:$0xff]
    %v316 = vld [vmem:[%s3 + $0x750] sm:$0xff]
    %v317 = vld [vmem:[%s3 + $0x758] sm:$0xff]
    %v318 = vld [vmem:[%s3 + $0x760] sm:$0xff]
    %v319 = vld [vmem:[%s3 + $0x768] sm:$0xff]
    %v320 = vld [vmem:[%s3 + $0x770] sm:$0xff]
    %v321 = vld [vmem:[%s3 + $0x778] sm:$0xff]
    %v322 = vld [vmem:[%s3 + $0x780] sm:$0xff]
    %v323 = vld [vmem:[%s3 + $0x788] sm:$0xff]
    %v324 = vld [vmem:[%s3 + $0x790] sm:$0xff]
    %v325 = vld [vmem:[%s3 + $0x798] sm:$0xff]
    %v326 = vld [vmem:[%s3 + $0x7a0] sm:$0xff]
    %v327 = vld [vmem:[%s3 + $0x7a8] sm:$0xff]
    %v328 = vld [vmem:[%s3 + $0x7b0] sm:$0xff]
    %v329 = vld [vmem:[%s3 + $0x7b8] sm:$0xff]
    %v330 = vld [vmem:[%s3 + $0x7c0] sm:$0xff]
    %v331 = vld [vmem:[%s3 + $0x7c8] sm:$0xff]
    %v332 = vld [vmem:[%s3 + $0x7d0] sm:$0xff]
    %v333 = vld [vmem:[%s3 + $0x7d8] sm:$0xff]
    %v334 = vld [vmem:[%s3 + $0x7e0] sm:$0xff]
    %v335 = vld [vmem:[%s3 + $0x7e8] sm:$0xff]
    %v336 = vld [vmem:[%s3 + $0x7f0] sm:$0xff]
    %v337 = vld [vmem:[%s3 + $0x7f8] sm:$0xff]
    %338 = vmatpush.msra.mxu0 %v97
    %339 = vmatpush.msra.mxu0 %v96
    %340 = vmatpush.msra.mxu0 %v95
    %341 = vmatpush.msra.mxu0 %v94
    %342 = vmatpush.msra.mxu0 %v93
    %343 = vmatpush.msra.mxu0 %v92
    %344 = vmatpush.msra.mxu0 %v91
    %345 = vmatpush.msra.mxu0 %v90
    %346 = vmatpush.msra.mxu0 %v89
    %347 = vmatpush.msra.mxu0 %v88
    %348 = vmatpush.msra.mxu0 %v87
    %349 = vmatpush.msra.mxu0 %v86
    %350 = vmatpush.msra.mxu0 %v85
    %351 = vmatpush.msra.mxu0 %v84
    %352 = vmatpush.msra.mxu0 %v83
    %353 = vmatpush.msra.mxu0 %v82
    %354 = vmatmul.f32.gmra.mxu0 %v66
    %v355 = vpop.f32.mrf.mxu0
    %v356 = vadd.f32 0.0, %v355
    %357 = vdwg.mxu0
    %358 = vmatpush.msra.mxu0 %v113
    %359 = vmatpush.msra.mxu0 %v112
    %360 = vmatpush.msra.mxu0 %v111
    %361 = vmatpush.msra.mxu0 %v110
    %362 = vmatpush.msra.mxu0 %v109
    %363 = vmatpush.msra.mxu0 %v108
    %364 = vmatpush.msra.mxu0 %v107
    %365 = vmatpush.msra.mxu0 %v106
    %366 = vmatpush.msra.mxu0 %v105
    %367 = vmatpush.msra.mxu0 %v104
    %368 = vmatpush.msra.mxu0 %v103
    %369 = vmatpush.msra.mxu0 %v102
    %370 = vmatpush.msra.mxu0 %v101
    %371 = vmatpush.msra.mxu0 %v100
    %372 = vmatpush.msra.mxu0 %v99
    %373 = vmatpush.msra.mxu0 %v98
    %374 = vmatmul.f32.gmra.mxu0 %v67
    %v375 = vpop.f32.mrf.mxu0
    %v376 = vadd.f32 %v356, %v375
    %377 = vdwg.mxu0
    %378 = vmatpush.msra.mxu0 %v129
    %379 = vmatpush.msra.mxu0 %v128
    %380 = vmatpush.msra.mxu0 %v127
    %381 = vmatpush.msra.mxu0 %v126
    %382 = vmatpush.msra.mxu0 %v125
    %383 = vmatpush.msra.mxu0 %v124
    %384 = vmatpush.msra.mxu0 %v123
    %385 = vmatpush.msra.mxu0 %v122
    %386 = vmatpush.msra.mxu0 %v121
    %387 = vmatpush.msra.mxu0 %v120
    %388 = vmatpush.msra.mxu0 %v119
    %389 = vmatpush.msra.mxu0 %v118
    %390 = vmatpush.msra.mxu0 %v117
    %391 = vmatpush.msra.mxu0 %v116
    %392 = vmatpush.msra.mxu0 %v115
    %393 = vmatpush.msra.mxu0 %v114
    %394 = vmatmul.f32.gmra.mxu0 %v68
    %v395 = vpop.f32.mrf.mxu0
    %v396 = vadd.f32 %v376, %v395
    %397 = vdwg.mxu0
    %398 = vmatpush.msra.mxu0 %v145
    %399 = vmatpush.msra.mxu0 %v144
    %400 = vmatpush.msra.mxu0 %v143
    %401 = vmatpush.msra.mxu0 %v142
    %402 = vmatpush.msra.mxu0 %v141
    %403 = vmatpush.msra.mxu0 %v140
    %404 = vmatpush.msra.mxu0 %v139
    %405 = vmatpush.msra.mxu0 %v138
    %406 = vmatpush.msra.mxu0 %v137
    %407 = vmatpush.msra.mxu0 %v136
    %408 = vmatpush.msra.mxu0 %v135
    %409 = vmatpush.msra.mxu0 %v134
    %410 = vmatpush.msra.mxu0 %v133
    %411 = vmatpush.msra.mxu0 %v132
    %412 = vmatpush.msra.mxu0 %v131
    %413 = vmatpush.msra.mxu0 %v130
    %414 = vmatmul.f32.gmra.mxu0 %v69
    %v415 = vpop.f32.mrf.mxu0
    %v416 = vadd.f32 %v396, %v415
    %417 = vdwg.mxu0
    %418 = vmatpush.msra.mxu0 %v161
    %419 = vmatpush.msra.mxu0 %v160
    %420 = vmatpush.msra.mxu0 %v159
    %421 = vmatpush.msra.mxu0 %v158
    %422 = vmatpush.msra.mxu0 %v157
    %423 = vmatpush.msra.mxu0 %v156
    %424 = vmatpush.msra.mxu0 %v155
    %425 = vmatpush.msra.mxu0 %v154
    %426 = vmatpush.msra.mxu0 %v153
    %427 = vmatpush.msra.mxu0 %v152
    %428 = vmatpush.msra.mxu0 %v151
    %429 = vmatpush.msra.mxu0 %v150
    %430 = vmatpush.msra.mxu0 %v149
    %431 = vmatpush.msra.mxu0 %v148
    %432 = vmatpush.msra.mxu0 %v147
    %433 = vmatpush.msra.mxu0 %v146
    %434 = vmatmul.f32.gmra.mxu0 %v70
    %v435 = vpop.f32.mrf.mxu0
    %v436 = vadd.f32 %v416, %v435
    %437 = vdwg.mxu0
    %438 = vmatpush.msra.mxu0 %v177
    %439 = vmatpush.msra.mxu0 %v176
    %440 = vmatpush.msra.mxu0 %v175
    %441 = vmatpush.msra.mxu0 %v174
    %442 = vmatpush.msra.mxu0 %v173
    %443 = vmatpush.msra.mxu0 %v172
    %444 = vmatpush.msra.mxu0 %v171
    %445 = vmatpush.msra.mxu0 %v170
    %446 = vmatpush.msra.mxu0 %v169
    %447 = vmatpush.msra.mxu0 %v168
    %448 = vmatpush.msra.mxu0 %v167
    %449 = vmatpush.msra.mxu0 %v166
    %450 = vmatpush.msra.mxu0 %v165
    %451 = vmatpush.msra.mxu0 %v164
    %452 = vmatpush.msra.mxu0 %v163
    %453 = vmatpush.msra.mxu0 %v162
    %454 = vmatmul.f32.gmra.mxu0 %v71
    %v455 = vpop.f32.mrf.mxu0
    %v456 = vadd.f32 %v436, %v455
    %457 = vdwg.mxu0
    %458 = vmatpush.msra.mxu0 %v193
    %459 = vmatpush.msra.mxu0 %v192
    %460 = vmatpush.msra.mxu0 %v191
    %461 = vmatpush.msra.mxu0 %v190
    %462 = vmatpush.msra.mxu0 %v189
    %463 = vmatpush.msra.mxu0 %v188
    %464 = vmatpush.msra.mxu0 %v187
    %465 = vmatpush.msra.mxu0 %v186
    %466 = vmatpush.msra.mxu0 %v185
    %467 = vmatpush.msra.mxu0 %v184
    %468 = vmatpush.msra.mxu0 %v183
    %469 = vmatpush.msra.mxu0 %v182
    %470 = vmatpush.msra.mxu0 %v181
    %471 = vmatpush.msra.mxu0 %v180
    %472 = vmatpush.msra.mxu0 %v179
    %473 = vmatpush.msra.mxu0 %v178
    %474 = vmatmul.f32.gmra.mxu0 %v72
    %v475 = vpop.f32.mrf.mxu0
    %v476 = vadd.f32 %v456, %v475
    %477 = vdwg.mxu0
    %478 = vmatpush.msra.mxu0 %v209
    %479 = vmatpush.msra.mxu0 %v208
    %480 = vmatpush.msra.mxu0 %v207
    %481 = vmatpush.msra.mxu0 %v206
    %482 = vmatpush.msra.mxu0 %v205
    %483 = vmatpush.msra.mxu0 %v204
    %484 = vmatpush.msra.mxu0 %v203
    %485 = vmatpush.msra.mxu0 %v202
    %486 = vmatpush.msra.mxu0 %v201
    %487 = vmatpush.msra.mxu0 %v200
    %488 = vmatpush.msra.mxu0 %v199
    %489 = vmatpush.msra.mxu0 %v198
    %490 = vmatpush.msra.mxu0 %v197
    %491 = vmatpush.msra.mxu0 %v196
    %492 = vmatpush.msra.mxu0 %v195
    %493 = vmatpush.msra.mxu0 %v194
    %494 = vmatmul.f32.gmra.mxu0 %v73
    %v495 = vpop.f32.mrf.mxu0
    %v496 = vadd.f32 %v476, %v495
    %497 = vdwg.mxu0
    %498 = vmatpush.msra.mxu0 %v225
    %499 = vmatpush.msra.mxu0 %v224
    %500 = vmatpush.msra.mxu0 %v223
    %501 = vmatpush.msra.mxu0 %v222
    %502 = vmatpush.msra.mxu0 %v221
    %503 = vmatpush.msra.mxu0 %v220
    %504 = vmatpush.msra.mxu0 %v219
    %505 = vmatpush.msra.mxu0 %v218
    %506 = vmatpush.msra.mxu0 %v217
    %507 = vmatpush.msra.mxu0 %v216
    %508 = vmatpush.msra.mxu0 %v215
    %509 = vmatpush.msra.mxu0 %v214
    %510 = vmatpush.msra.mxu0 %v213
    %511 = vmatpush.msra.mxu0 %v212
    %512 = vmatpush.msra.mxu0 %v211
    %513 = vmatpush.msra.mxu0 %v210
    %514 = vmatmul.f32.gmra.mxu0 %v74
    %v515 = vpop.f32.mrf.mxu0
    %v516 = vadd.f32 %v496, %v515
    %517 = vdwg.mxu0
    %518 = vmatpush.msra.mxu0 %v241
    %519 = vmatpush.msra.mxu0 %v240
    %520 = vmatpush.msra.mxu0 %v239
    %521 = vmatpush.msra.mxu0 %v238
    %522 = vmatpush.msra.mxu0 %v237
    %523 = vmatpush.msra.mxu0 %v236
    %524 = vmatpush.msra.mxu0 %v235
    %525 = vmatpush.msra.mxu0 %v234
    %526 = vmatpush.msra.mxu0 %v233
    %527 = vmatpush.msra.mxu0 %v232
    %528 = vmatpush.msra.mxu0 %v231
    %529 = vmatpush.msra.mxu0 %v230
    %530 = vmatpush.msra.mxu0 %v229
    %531 = vmatpush.msra.mxu0 %v228
    %532 = vmatpush.msra.mxu0 %v227
    %533 = vmatpush.msra.mxu0 %v226
    %534 = vmatmul.f32.gmra.mxu0 %v75
    %v535 = vpop.f32.mrf.mxu0
    %v536 = vadd.f32 %v516, %v535
    %537 = vdwg.mxu0
    %538 = vmatpush.msra.mxu0 %v257
    %539 = vmatpush.msra.mxu0 %v256
    %540 = vmatpush.msra.mxu0 %v255
    %541 = vmatpush.msra.mxu0 %v254
    %542 = vmatpush.msra.mxu0 %v253
    %543 = vmatpush.msra.mxu0 %v252
    %544 = vmatpush.msra.mxu0 %v251
    %545 = vmatpush.msra.mxu0 %v250
    %546 = vmatpush.msra.mxu0 %v249
    %547 = vmatpush.msra.mxu0 %v248
    %548 = vmatpush.msra.mxu0 %v247
    %549 = vmatpush.msra.mxu0 %v246
    %550 = vmatpush.msra.mxu0 %v245
    %551 = vmatpush.msra.mxu0 %v244
    %552 = vmatpush.msra.mxu0 %v243
    %553 = vmatpush.msra.mxu0 %v242
    %554 = vmatmul.f32.gmra.mxu0 %v76
    %v555 = vpop.f32.mrf.mxu0
    %v556 = vadd.f32 %v536, %v555
    %557 = vdwg.mxu0
    %558 = vmatpush.msra.mxu0 %v273
    %559 = vmatpush.msra.mxu0 %v272
    %560 = vmatpush.msra.mxu0 %v271
    %561 = vmatpush.msra.mxu0 %v270
    %562 = vmatpush.msra.mxu0 %v269
    %563 = vmatpush.msra.mxu0 %v268
    %564 = vmatpush.msra.mxu0 %v267
    %565 = vmatpush.msra.mxu0 %v266
    %566 = vmatpush.msra.mxu0 %v265
    %567 = vmatpush.msra.mxu0 %v264
    %568 = vmatpush.msra.mxu0 %v263
    %569 = vmatpush.msra.mxu0 %v262
    %570 = vmatpush.msra.mxu0 %v261
    %571 = vmatpush.msra.mxu0 %v260
    %572 = vmatpush.msra.mxu0 %v259
    %573 = vmatpush.msra.mxu0 %v258
    %574 = vmatmul.f32.gmra.mxu0 %v77
    %v575 = vpop.f32.mrf.mxu0
    %v576 = vadd.f32 %v556, %v575
    %577 = vdwg.mxu0
    %578 = vmatpush.msra.mxu0 %v289
    %579 = vmatpush.msra.mxu0 %v288
    %580 = vmatpush.msra.mxu0 %v287
    %581 = vmatpush.msra.mxu0 %v286
    %582 = vmatpush.msra.mxu0 %v285
    %583 = vmatpush.msra.mxu0 %v284
    %584 = vmatpush.msra.mxu0 %v283
    %585 = vmatpush.msra.mxu0 %v282
    %586 = vmatpush.msra.mxu0 %v281
    %587 = vmatpush.msra.mxu0 %v280
    %588 = vmatpush.msra.mxu0 %v279
    %589 = vmatpush.msra.mxu0 %v278
    %590 = vmatpush.msra.mxu0 %v277
    %591 = vmatpush.msra.mxu0 %v276
    %592 = vmatpush.msra.mxu0 %v275
    %593 = vmatpush.msra.mxu0 %v274
    %594 = vmatmul.f32.gmra.mxu0 %v78
    %v595 = vpop.f32.mrf.mxu0
    %v596 = vadd.f32 %v576, %v595
    %597 = vdwg.mxu0
    %598 = vmatpush.msra.mxu0 %v305
    %599 = vmatpush.msra.mxu0 %v304
    %600 = vmatpush.msra.mxu0 %v303
    %601 = vmatpush.msra.mxu0 %v302
    %602 = vmatpush.msra.mxu0 %v301
    %603 = vmatpush.msra.mxu0 %v300
    %604 = vmatpush.msra.mxu0 %v299
    %605 = vmatpush.msra.mxu0 %v298
    %606 = vmatpush.msra.mxu0 %v297
    %607 = vmatpush.msra.mxu0 %v296
    %608 = vmatpush.msra.mxu0 %v295
    %609 = vmatpush.msra.mxu0 %v294
    %610 = vmatpush.msra.mxu0 %v293
    %611 = vmatpush.msra.mxu0 %v292
    %612 = vmatpush.msra.mxu0 %v291
    %613 = vmatpush.msra.mxu0 %v290
    %614 = vmatmul.f32.gmra.mxu0 %v79
    %v615 = vpop.f32.mrf.mxu0
    %v616 = vadd.f32 %v596, %v615
    %617 = vdwg.mxu0
    %618 = vmatpush.msra.mxu0 %v321
    %619 = vmatpush.msra.mxu0 %v320
    %620 = vmatpush.msra.mxu0 %v319
    %621 = vmatpush.msra.mxu0 %v318
    %622 = vmatpush.msra.mxu0 %v317
    %623 = vmatpush.msra.mxu0 %v316
    %624 = vmatpush.msra.mxu0 %v315
    %625 = vmatpush.msra.mxu0 %v314
    %626 = vmatpush.msra.mxu0 %v313
    %627 = vmatpush.msra.mxu0 %v312
    %628 = vmatpush.msra.mxu0 %v311
    %629 = vmatpush.msra.mxu0 %v310
    %630 = vmatpush.msra.mxu0 %v309
    %631 = vmatpush.msra.mxu0 %v308
    %632 = vmatpush.msra.mxu0 %v307
    %633 = vmatpush.msra.mxu0 %v306
    %634 = vmatmul.f32.gmra.mxu0 %v80
    %v635 = vpop.f32.mrf.mxu0
    %v636 = vadd.f32 %v616, %v635
    %637 = vdwg.mxu0
    %638 = vmatpush.msra.mxu0 %v337
    %639 = vmatpush.msra.mxu0 %v336
    %640 = vmatpush.msra.mxu0 %v335
    %641 = vmatpush.msra.mxu0 %v334
    %642 = vmatpush.msra.mxu0 %v333
    %643 = vmatpush.msra.mxu0 %v332
    %644 = vmatpush.msra.mxu0 %v331
    %645 = vmatpush.msra.mxu0 %v330
    %646 = vmatpush.msra.mxu0 %v329
    %647 = vmatpush.msra.mxu0 %v328
    %648 = vmatpush.msra.mxu0 %v327
    %649 = vmatpush.msra.mxu0 %v326
    %650 = vmatpush.msra.mxu0 %v325
    %651 = vmatpush.msra.mxu0 %v324
    %652 = vmatpush.msra.mxu0 %v323
    %653 = vmatpush.msra.mxu0 %v322
    %654 = vmatmul.f32.gmra.mxu0 %v81
    %v655 = vpop.f32.mrf.mxu0
    %v656 = vadd.f32 %v636, %v655
    %657 = vdwg.mxu0
    %658 = vmatpush.msra.mxu0 %v65
    %659 = vmatpush.msra.mxu0 %v64
    %660 = vmatpush.msra.mxu0 %v63
    %661 = vmatpush.msra.mxu0 %v62
    %662 = vmatpush.msra.mxu0 %v61
    %663 = vmatpush.msra.mxu0 %v60
    %664 = vmatpush.msra.mxu0 %v59
    %665 = vmatpush.msra.mxu0 %v58
    %666 = vmatpush.msra.mxu0 %v57
    %667 = vmatpush.msra.mxu0 %v56
    %668 = vmatpush.msra.mxu0 %v55
    %669 = vmatpush.msra.mxu0 %v54
    %670 = vmatpush.msra.mxu0 %v53
    %671 = vmatpush.msra.mxu0 %v52
    %672 = vmatpush.msra.mxu0 %v51
    %673 = vmatpush.msra.mxu0 %v50
    %674 = vmatmul.f32.gmra.mxu0 %v49
    %v675 = vpop.f32.mrf.mxu0
    %v676 = vadd.f32 %v656, %v675
    %677 = vdwg.mxu0
    %v678 = vld [vmem:[%s4] sm:$0x1]
    %v680 = vperm.slane %v678, 0
    %v682 = vadd.f32 %v676, %v680
    %v683 = vmax.f32 %v682, 0.0
    %v684 = vld [vmem:[%s5] sm:$0xff]
    %v685 = vld [vmem:[%s5 + $0x8] sm:$0xff]
    %v686 = vld [vmem:[%s5 + $0x10] sm:$0xff]
    %v687 = vld [vmem:[%s5 + $0x18] sm:$0xff]
    %v688 = vld [vmem:[%s6] sm:$0x1]
    %v690 = vperm.slane %v688, 0
    %vm692 = vcmask 261120
    %v694 = vsel %vm692, %v683, 0
    %696 = vmatpush.msra.mxu0 0.0
    %697 = vmatpush.msra.mxu0 0.0
    %698 = vmatpush.msra.mxu0 0.0
    %699 = vmatpush.msra.mxu0 0.0
    %700 = vmatpush.msra.mxu0 0.0
    %701 = vmatpush.msra.mxu0 0.0
    %702 = vmatpush.msra.mxu0 0.0
    %703 = vmatpush.msra.mxu0 0.0
    %704 = vmatpush.msra.mxu0 0.0
    %705 = vmatpush.msra.mxu0 0.0
    %706 = vmatpush.msra.mxu0 0.0
    %707 = vmatpush.msra.mxu0 0.0
    %708 = vmatpush.msra.mxu0 %v687
    %709 = vmatpush.msra.mxu0 %v686
    %710 = vmatpush.msra.mxu0 %v685
    %711 = vmatpush.msra.mxu0 %v684
    %712 = vmatmul.f32.gmra.mxu0 %v694
    %v713 = vpop.f32.mrf.mxu0
    %v714 = vadd.f32 %v690, %v713
    %715 = vdwg.mxu0
    %v716 = vmax.f32 %v714, 0.0
    %v717 = vld [vmem:[%s7] sm:$0xff]
    %v718 = vld [vmem:[%s7 + $0x8] sm:$0xff]
    %v719 = vld [vmem:[%s7 + $0x10] sm:$0xff]
    %v720 = vld [vmem:[%s7 + $0x18] sm:$0xff]
    %v721 = vld [vmem:[%s8] sm:$0x1]
    %v723 = vperm.slane %v721, 0
    %v726 = vsel %vm692, %v716, 0
    %728 = vmatpush.msra.mxu0 0.0
    %729 = vmatpush.msra.mxu0 0.0
    %730 = vmatpush.msra.mxu0 0.0
    %731 = vmatpush.msra.mxu0 0.0
    %732 = vmatpush.msra.mxu0 0.0
    %733 = vmatpush.msra.mxu0 0.0
    %734 = vmatpush.msra.mxu0 0.0
    %735 = vmatpush.msra.mxu0 0.0
    %736 = vmatpush.msra.mxu0 0.0
    %737 = vmatpush.msra.mxu0 0.0
    %738 = vmatpush.msra.mxu0 0.0
    %739 = vmatpush.msra.mxu0 0.0
    %740 = vmatpush.msra.mxu0 %v720
    %741 = vmatpush.msra.mxu0 %v719
    %742 = vmatpush.msra.mxu0 %v718
    %743 = vmatpush.msra.mxu0 %v717
    %744 = vmatmul.f32.gmra.mxu0 %v726
    %v745 = vpop.f32.mrf.mxu0
    %v746 = vadd.f32 %v723, %v745
    %747 = vdwg.mxu0
    %v748 = vld [vmem:[%s9] sm:$0xff]
    %v749 = vld [vmem:[%s9 + $0x8] sm:$0xff]
    %v750 = vld [vmem:[%s9 + $0x10] sm:$0xff]
    %v751 = vld [vmem:[%s9 + $0x18] sm:$0xff]
    %v752 = vld [vmem:[%s10] sm:$0x1]
    %v754 = vperm.slane %v752, 0
    %v757 = vsel %vm692, %v746, 0
    %759 = vmatpush.msra.mxu0 0.0
    %760 = vmatpush.msra.mxu0 0.0
    %761 = vmatpush.msra.mxu0 0.0
    %762 = vmatpush.msra.mxu0 0.0
    %763 = vmatpush.msra.mxu0 0.0
    %764 = vmatpush.msra.mxu0 0.0
    %765 = vmatpush.msra.mxu0 0.0
    %766 = vmatpush.msra.mxu0 0.0
    %767 = vmatpush.msra.mxu0 0.0
    %768 = vmatpush.msra.mxu0 0.0
    %769 = vmatpush.msra.mxu0 0.0
    %770 = vmatpush.msra.mxu0 0.0
    %771 = vmatpush.msra.mxu0 %v751
    %772 = vmatpush.msra.mxu0 %v750
    %773 = vmatpush.msra.mxu0 %v749
    %774 = vmatpush.msra.mxu0 %v748
    %775 = vmatmul.f32.gmra.mxu0 %v757
    %v776 = vpop.f32.mrf.mxu0
    %v777 = vadd.f32 %v754, %v776
    %778 = vdwg.mxu0
    %v779 = vld [vmem:[%s11] sm:$0xff]
    %v780 = vld [vmem:[%s11 + $0x8] sm:$0xff]
    %v781 = vld [vmem:[%s11 + $0x10] sm:$0xff]
    %v782 = vld [vmem:[%s11 + $0x18] sm:$0xff]
    %v783 = vld [vmem:[%s12] sm:$0x1]
    %v785 = vperm.slane %v783, 0
    %787 = vmatpush.msra.mxu0 0.0
    %788 = vmatpush.msra.mxu0 0.0
    %789 = vmatpush.msra.mxu0 0.0
    %790 = vmatpush.msra.mxu0 0.0
    %791 = vmatpush.msra.mxu0 0.0
    %792 = vmatpush.msra.mxu0 0.0
    %793 = vmatpush.msra.mxu0 0.0
    %794 = vmatpush.msra.mxu0 0.0
    %795 = vmatpush.msra.mxu0 0.0
    %796 = vmatpush.msra.mxu0 0.0
    %797 = vmatpush.msra.mxu0 0.0
    %798 = vmatpush.msra.mxu0 0.0
    %799 = vmatpush.msra.mxu0 %v782
    %800 = vmatpush.msra.mxu0 %v781
    %801 = vmatpush.msra.mxu0 %v780
    %802 = vmatpush.msra.mxu0 %v779
    %803 = vmatmul.f32.gmra.mxu0 %v757
    %v804 = vpop.f32.mrf.mxu0
    %v805 = vadd.f32 %v785, %v804
    %806 = vdwg.mxu0
    %807 = vst [vmem:[#allocation2] sm:$0xff] %v777
    %v808 = vadd.f32 %v777, %v49
    %809 = vst [vmem:[#allocation4] sm:$0xff] %v808
    %vm810 = vcmp.gt.f32.partialorder %v805, 0.0
    %v811 = vadd.f32 %v805, 1.0
    %v812 = vmul.f32 %v805, 1.442695
    %v813 = vpow.pop %v812
    %v814 = vsel %vm810, %v811, %v813
    %815 = vst [vmem:[#allocation6] sm:$0xff] %v814
    // Predicated region
    $region54: #{tpu_custom_call.1} parent=1 // pred_check
      _
    $region55: #{tpu_custom_call.1} parent=1 // pred_check_branch
      %817 = sbr.rel (0) target = $region57
    $region56: #{tpu_custom_call.1} parent=1 // pred_region
      %819 = vsyncadd [#allocation3], 0
      %s821 = sshll.u32 [#allocation2], 4
      %s822 = int_to_ptr.vmem [resolvable:$true] %s821
      %s823 = sshll.u32 %s13, 4
      %s824 = int_to_ptr.hbm [resolvable:$true] %s823
      %826 = dma.vmem_to_hbm [thread:$0]  %s822, 128, %s824, [#allocation3]
    $region57: #{tpu_custom_call.1} parent=1 // pred_fallthru
      _
    // Predicated region
    $region58: #{tpu_custom_call.1} parent=1 // pred_check
      _
    $region59: #{tpu_custom_call.1} parent=1 // pred_check_branch
      %828 = sbr.rel (0) target = $region61
    $region60: #{tpu_custom_call.1} parent=1 // pred_region
      %830 = vsyncadd [#allocation5], 0
      %s832 = sshll.u32 [#allocation4], 4
      %s833 = int_to_ptr.vmem [resolvable:$true] %s832
      %s834 = sshll.u32 %s14, 4
      %s835 = int_to_ptr.hbm [resolvable:$true] %s834
      %837 = dma.vmem_to_hbm [thread:$0]  %s833, 128, %s835, [#allocation5]
    $region61: #{tpu_custom_call.1} parent=1 // pred_fallthru
      _
    // Predicated region
    $region62: #{tpu_custom_call.1} parent=1 // pred_check
      _
    $region63: #{tpu_custom_call.1} parent=1 // pred_check_branch
      %839 = sbr.rel (0) target = $region65
    $region64: #{tpu_custom_call.1} parent=1 // pred_region
      %841 = vsyncadd [#allocation5], 0
      %s843 = sshll.u32 [#allocation6], 4
      %s844 = int_to_ptr.vmem [resolvable:$true] %s843
      %s845 = sshll.u32 %s15, 4
      %s846 = int_to_ptr.hbm [resolvable:$true] %s845
      %848 = dma.vmem_to_hbm [thread:$0]  %s844, 128, %s846, [#allocation5]
    $region65: #{tpu_custom_call.1} parent=1 // pred_fallthru
      _
    // Predicated region
    $region66: #{tpu_custom_call.1} parent=1 // pred_check
      _
    $region67: #{tpu_custom_call.1} parent=1 // pred_check_branch
      %850 = sbr.rel (0) target = $region69
    $region68: #{tpu_custom_call.1} parent=1 // pred_region
      %852 = dma.done [#allocation3], 128
    $region69: #{tpu_custom_call.1} parent=1 // pred_fallthru
      _
    // Predicated region
    $region70: #{tpu_custom_call.1} parent=1 // pred_check
      _
    $region71: #{tpu_custom_call.1} parent=1 // pred_check_branch
      %854 = sbr.rel (0) target = $region73
    $region72: #{tpu_custom_call.1} parent=1 // pred_region
      %856 = dma.done [#allocation5], 128
    $region73: #{tpu_custom_call.1} parent=1 // pred_fallthru
      _
    // Predicated region
    $region74: #{tpu_custom_call.1} parent=1 // pred_check
      _
    $region75: #{tpu_custom_call.1} parent=1 // pred_check_branch
      %858 = sbr.rel (0) target = $region77
    $region76: #{tpu_custom_call.1} parent=1 // pred_region
      %860 = dma.done [#allocation5], 128
    $region77: #{tpu_custom_call.1} parent=1 // pred_fallthru
      _
    %861 = vsyncpa [#allocation3], 1
    %862 = vsyncpa [#allocation5], 1

</llo_original>
